<compile_context>
chip_gen: v7x
topology: tpu7x:2x2x1
jax: 0.10.0
libtpu: 0.0.40
codegen_flags: <defaults>
</compile_context>

<pallas_src>
import jax
import jax.numpy as jnp
from jax.experimental import pallas as pl
from jax.experimental.pallas import tpu as pltpu


def _accumulate(o_ref, value):
    """Init-at-first-reduction-step / accumulate into the per-partition SMEM scalar."""

    @pl.when((pl.program_id(1) == 0) & (pl.program_id(2) == 0))
    def _():
        o_ref[0, 0] = jnp.float32(0.0)

    o_ref[0, 0] += value


def _tv_kernel_slice(x_ref, o_ref):
    """Fallback path: off-by-one slice diffs (works for any TH, W)."""
    x = x_ref[...].astype(jnp.float32)  # (P, TH, W) block, upcast once in VMEM
    total = jnp.float32(0.0)
    if x.shape[1] > 1:
        total += jnp.abs(x[:, 1:, :] - x[:, :-1, :]).sum()
    if x.shape[2] > 1:
        total += jnp.abs(x[:, :, 1:] - x[:, :, :-1]).sum()
    _accumulate(o_ref, total)


def _tv_kernel_roll(x_ref, o_ref):
    """Fast path (TH % 8 == 0, W % 128 == 0): wrap-corrected XLU roll diffs,
    bulk reduction pushed onto the (idle) MXU via a ones-column matmul."""
    xf = x_ref[...].astype(jnp.float32)  # (P, TH, W); single upcast in VMEM
    th, w = xf.shape[1], xf.shape[2]
    dh = jnp.abs(xf - pltpu.roll(xf, shift=1, axis=1))
    dw = jnp.abs(xf - pltpu.roll(xf, shift=1, axis=2))
    # Circular sums count one extra wrap pair per row/column; subtract those from
    # tiny edge slices instead of iota-masking the whole block.  (Correct for either
    # roll sign convention: the circular pair set is identical.)
    wrap_h = jnp.abs(xf[:, 0:1, :] - xf[:, th - 1:th, :]).sum()
    wrap_w = jnp.abs(xf[:, :, 0:1] - xf[:, :, w - 1:w]).sum()
    # Bulk add-reduce on the MXU: (P*TH, W) @ ones(W, 1), f32 accumulation.  The
    # reshape is relayout-free because TH % 8 == 0 and W % 128 == 0.
    t = (dh + dw).reshape(-1, w)
    col = jnp.dot(t, jnp.ones((w, 1), jnp.float32),
                  precision=jax.lax.Precision.HIGHEST,
                  preferred_element_type=jnp.float32)
    _accumulate(o_ref, col.sum() - wrap_h - wrap_w)


def total_variation_loss(image: jax.Array, *, target_block_bytes: int = 2 << 20,
                         num_partitions: int = 2,
                         vmem_limit_bytes: int = 48 * 1024 * 1024) -> jax.Array:
    """Total variation loss of an NCHW image. Returns a float32 scalar."""
    B, C, H, W = image.shape
    # TV loss is symmetric in H/W: put the long axis on the 128-lane dimension when
    # W is badly lane-underutilised (costs one transpose pass through HBM).
    if W < 128 <= H:
        image = jnp.swapaxes(image, 2, 3)
        H, W = W, H

    n_planes = B * C
    planes_src = image.reshape(n_planes, H, W)  # native dtype; upcast happens in-kernel
    itemsize = planes_src.dtype.itemsize

    # --- block sizing: P whole planes per block, or 1 plane x TH-row strips --------
    plane_bytes = H * W * itemsize
    if plane_bytes <= target_block_bytes:
        P = int(min(n_planes, max(1, target_block_bytes // plane_bytes)))
        TH, nh = H, 1
    else:
        # Plane exceeds the block budget: tile H into multiple-of-8 row strips so the
        # block (1, TH, W) stays within the per-generation VMEM budget.
        P = 1
        TH = int(max(8, ((target_block_bytes // (W * itemsize)) // 8) * 8))
        if TH >= H:
            TH, nh = H, 1
        else:
            nh = int(pl.cdiv(H, TH))
    H_pad = nh * TH

    n_plane_blocks = int(pl.cdiv(n_planes, P))
    n_parts = int(min(num_partitions, n_plane_blocks))  # "parallel" axis (2 TCs on v7x)
    n_inner = int(pl.cdiv(n_plane_blocks, n_parts))     # per-partition reduction axis
    planes_pad = n_parts * n_inner * P

    planes = planes_src
    if planes_pad != n_planes or H_pad != H:
        # Zero planes / zero rows contribute no in-plane diffs; the single spurious
        # |0 - x[:, H-1, :]| junction term (only when H is padded) is subtracted below.
        planes = jnp.pad(planes_src,
                         ((0, planes_pad - n_planes), (0, H_pad - H), (0, 0)))

    aligned = (TH % 8 == 0) and (W % 128 == 0) and TH > 1 and W > 1
    kernel = _tv_kernel_roll if aligned else _tv_kernel_slice

    partials = pl.pallas_call(
        kernel,
        out_shape=jax.ShapeDtypeStruct((n_parts, 1), jnp.float32),
        grid_spec=pltpu.PrefetchScalarGridSpec(
            num_scalar_prefetch=0,
            grid=(n_parts, n_inner, nh),
            in_specs=[
                # P planes x TH rows per block; W is always the full lane extent.
                pl.BlockSpec(
                    (P, TH, W),
                    lambda part, inner, ht: (part * n_inner + inner, ht, 0),
                ),
            ],
            # One (1,1) SMEM partial per partition, revisited across both inner axes.
            out_specs=pl.BlockSpec(
                (1, 1), lambda part, inner, ht: (part, 0), memory_space=pltpu.SMEM
            ),
        ),
        compiler_params=pltpu.CompilerParams(
            dimension_semantics=("parallel", "arbitrary", "arbitrary"),
            vmem_limit_bytes=vmem_limit_bytes,
        ),
    )(planes)

    total = partials.sum()
    if nh > 1:
        # Cross-strip H-diffs dropped by the non-overlapping TH tiling: rows
        # (k*TH - 1, k*TH) for k = 1..nh-1, all within the original (unpadded) H.
        prev = planes_src[:, TH - 1:(nh - 1) * TH:TH, :].astype(jnp.float32)
        nxt = planes_src[:, TH:(nh - 1) * TH + 1:TH, :].astype(jnp.float32)
        total = total + jnp.abs(nxt - prev).sum()
    if H_pad != H:
        # Spurious junction diff against the first zero-pad row inside the last strip.
        total = total - jnp.abs(planes_src[:, H - 1, :].astype(jnp.float32)).sum()
    return total


def total_variation_loss_ref(image: jax.Array) -> jax.Array:
    x = image.astype(jnp.float32)
    dh = jnp.abs(x[:, :, 1:, :] - x[:, :, :-1, :])
    dw = jnp.abs(x[:, :, :, 1:] - x[:, :, :, :-1])
    return dh.sum() + dw.sum()


if __name__ == "__main__":
    key = jax.random.PRNGKey(0)
    keys = jax.random.split(key, 6)

    # Small cases exercising: slice path, roll path (wrap-corrected + MXU reduce),
    # plane folding, partitioning + zero-plane padding, bf16 streaming, H-strip
    # tiling with boundary/junction corrections, and the small-W transpose.
    cases = [
        (jax.random.normal(keys[0], (2, 4, 16, 16), dtype=jnp.float32), {}),
        (jax.random.normal(keys[1], (1, 5, 16, 64), dtype=jnp.float32).astype(jnp.bfloat16),
         dict(target_block_bytes=2048)),      # slice path, 2 partitions, pad 1 zero plane
        (jax.random.normal(keys[2], (2, 2, 16, 128), dtype=jnp.float32), {}),   # roll path, P=4
        (jax.random.normal(keys[3], (1, 1, 64, 128), dtype=jnp.float32),
         dict(target_block_bytes=8192)),      # roll path, H-tiling (nh=4) + boundary terms
        (jax.random.normal(keys[4], (1, 1, 50, 64), dtype=jnp.float32),
         dict(target_block_bytes=4096)),      # slice path, H-tiling + zero-row pad + junction
        (jax.random.normal(keys[5], (1, 2, 256, 16), dtype=jnp.float32).astype(jnp.bfloat16),
         {}),                                 # small-W transpose -> roll path, bf16
    ]
    for x, kwargs in cases:
        tv = jax.block_until_ready(total_variation_loss(x, **kwargs))
        tv_ref = jax.block_until_ready(total_variation_loss_ref(x))
        assert jnp.allclose(tv, tv_ref, rtol=5e-4, atol=1e-2), (x.shape, tv, tv_ref)

    print("KERNEL_OK")
</pallas_src>

<mosaic_0001>
module attributes {stable_mosaic.version = 11 : i64} {
  func.func @_tv_kernel_slice(%arg0: i32, %arg1: i32, %arg2: i32, %arg3: memref<8x16x16xf32, #tpu.memory_space<vmem>>, %arg4: memref<1x1xf32, #tpu.memory_space<smem>>) attributes {dimension_semantics = [#tpu.dimension_semantics<parallel>, #tpu.dimension_semantics<arbitrary>, #tpu.dimension_semantics<arbitrary>], iteration_bounds = array<i64: 1, 1, 1>, scalar_prefetch = 0 : i64, scratch_operands = 0 : i64, tpu.core_type = #tpu.core_type<tc>, window_params = [{transform_indices = @transform_0, window_bounds = array<i64: 8, 16, 16>}, {transform_indices = @transform_1, window_bounds = array<i64: 1, 1>}]} {
    %c0 = arith.constant 0 : index
    %c0_0 = arith.constant 0 : index
    %c0_1 = arith.constant 0 : index
    %0 = vector.load %arg3[%c0, %c0_0, %c0_1] : memref<8x16x16xf32, #tpu.memory_space<vmem>>, vector<8x16x16xf32>
    %1 = vector.extract_strided_slice %0 {offsets = [0, 1, 0], sizes = [8, 15, 16], strides = [1, 1, 1]} : vector<8x16x16xf32> to vector<8x15x16xf32>
    %2 = vector.extract_strided_slice %0 {offsets = [0, 0, 0], sizes = [8, 15, 16], strides = [1, 1, 1]} : vector<8x16x16xf32> to vector<8x15x16xf32>
    %3 = arith.subf %1, %2 : vector<8x15x16xf32>
    %4 = math.absf %3 : vector<8x15x16xf32>
    %5 = vector.shape_cast %4 : vector<8x15x16xf32> to vector<1x8x15x16xf32>
    %cst = arith.constant dense<0.000000e+00> : vector<1xf32>
    %6 = vector.multi_reduction <add>, %5, %cst [1, 2, 3] : vector<1x8x15x16xf32> to vector<1xf32>
    %7 = vector.shape_cast %6 : vector<1xf32> to vector<1x1x1x1xf32>
    %8 = vector.extract %7[0, 0, 0, 0] : f32 from vector<1x1x1x1xf32>
    %cst_2 = arith.constant 0.000000e+00 : f32
    %9 = arith.addf %cst_2, %8 : f32
    %10 = vector.extract_strided_slice %0 {offsets = [0, 0, 1], sizes = [8, 16, 15], strides = [1, 1, 1]} : vector<8x16x16xf32> to vector<8x16x15xf32>
    %11 = vector.extract_strided_slice %0 {offsets = [0, 0, 0], sizes = [8, 16, 15], strides = [1, 1, 1]} : vector<8x16x16xf32> to vector<8x16x15xf32>
    %12 = arith.subf %10, %11 : vector<8x16x15xf32>
    %13 = math.absf %12 : vector<8x16x15xf32>
    %14 = vector.shape_cast %13 : vector<8x16x15xf32> to vector<1x8x16x15xf32>
    %cst_3 = arith.constant dense<0.000000e+00> : vector<1xf32>
    %15 = vector.multi_reduction <add>, %14, %cst_3 [1, 2, 3] : vector<1x8x16x15xf32> to vector<1xf32>
    %16 = vector.shape_cast %15 : vector<1xf32> to vector<1x1x1x1xf32>
    %17 = vector.extract %16[0, 0, 0, 0] : f32 from vector<1x1x1x1xf32>
    %18 = arith.addf %9, %17 : f32
    %c0_i32 = arith.constant 0 : i32
    %19 = arith.cmpi eq, %arg1, %c0_i32 : i32
    %c0_i32_4 = arith.constant 0 : i32
    %20 = arith.cmpi eq, %arg2, %c0_i32_4 : i32
    %21 = arith.andi %19, %20 : i1
    %22 = arith.extui %21 : i1 to i32
    %c0_i32_5 = arith.constant 0 : i32
    %23 = arith.cmpi ne, %22, %c0_i32_5 : i32
    scf.if %23 {
      %cst_10 = arith.constant 0.000000e+00 : f32
      %c0_11 = arith.constant 0 : index
      %c0_12 = arith.constant 0 : index
      %27 = memref.load %arg4[%c0_11, %c0_12] : memref<1x1xf32, #tpu.memory_space<smem>>
      memref.store %cst_10, %arg4[%c0_11, %c0_12] : memref<1x1xf32, #tpu.memory_space<smem>>
    } else {
    }
    %c0_6 = arith.constant 0 : index
    %c0_7 = arith.constant 0 : index
    %24 = memref.load %arg4[%c0_6, %c0_7] : memref<1x1xf32, #tpu.memory_space<smem>>
    %25 = arith.addf %24, %18 : f32
    %c0_8 = arith.constant 0 : index
    %c0_9 = arith.constant 0 : index
    %26 = memref.load %arg4[%c0_8, %c0_9] : memref<1x1xf32, #tpu.memory_space<smem>>
    memref.store %25, %arg4[%c0_8, %c0_9] : memref<1x1xf32, #tpu.memory_space<smem>>
    return
  }
  func.func @transform_0(%arg0: i32, %arg1: i32, %arg2: i32) -> (i32, i32, i32) {
    %c1_i32 = arith.constant 1 : i32
    %0 = arith.muli %arg0, %c1_i32 : i32
    %1 = arith.addi %0, %arg1 : i32
    %c0_i32 = arith.constant 0 : i32
    %c0_i32_0 = arith.constant 0 : i32
    return %1, %arg2, %c0_i32 : i32, i32, i32
  }
  func.func @transform_1(%arg0: i32, %arg1: i32, %arg2: i32) -> (i32, i32) {
    %c0_i32 = arith.constant 0 : i32
    %c0_i32_0 = arith.constant 0 : i32
    return %arg0, %c0_i32 : i32, i32
  }
}

</mosaic_0001>

<llo_original>
// kernel: tpu_custom_call.1
$region0: #{tpu_custom_call.1}
  #allocation0 [shape = 'u32[]', space=smem, size = 0x4, offset = 0x4, fixed_abs, tag = 'smem constant byte address 0x4 - core index']
  #allocation1 [shape = 'u32[144,128]{1,0:T(1,128)}', space=vmem, size = 0x12000, scoped, tag = 'internal scratch']
  %s0 = inlined_call_operand.hbm [shape: f32[8,16,16], index: 0, kind: input, shape index: {}]
  %s1 = inlined_call_operand.hbm [shape: f32[1,1], index: 1, kind: output, shape index: {}]
  %s2 = sld [smem:[#allocation0]]
  $region22: #{tpu_custom_call.1} parent=0
    _
  %s4 = ssub.s32 1, %s2
  %s5 = scalar_select 0, %s4, %s2
  $region1: #{tpu_custom_call.1} parent=0
    #allocation2 [shape = 'u8[65536]{0}', space=vmem, size = 0x10000, scoped, tag = 'input window, operand 0, single buffered']
    #allocation3 [shape = 's32[1]{0}', space=sflag, size = 0x4, scoped, tag = 'scoped memory for tpu_custom_call.1']
    #allocation4 [shape = 's32[1]{0}', space=sflag, size = 0x4, scoped, tag = 'scoped memory for tpu_custom_call.1']
    #allocation5 [shape = 'u8[512]{0}', space=smem, size = 0x200, scoped, tag = 'output window, operand 0, single buffered']
    %6 = vsyncpa [#allocation3], 0
    %7 = vsyncpa [#allocation4], 0
    // Predicated region
    $region2: #{tpu_custom_call.1} parent=1 // pred_check
      _
    $region3: #{tpu_custom_call.1} parent=1 // pred_check_branch
      %9 = sbr.rel (0) target = $region5
    $region4: #{tpu_custom_call.1} parent=1 // pred_region
      %s10 = sadd.s32 0, 0
      %s11 = smul.u32 8, %s10
      %s13 = ssub.s32 2048, 2048
      %14 = vsyncadd [#allocation3], %s13
      %s15 = smul.addr %s11, 2
      %s16 = smul.addr %s15, 128
      %s17 = scalar_lea.hbm %s0, %s16
      %s18 = sshll.u32 [#allocation2], 4
      %s19 = int_to_ptr.vmem [resolvable:$true] %s18
      %24 = dma.hbm_to_vmem [thread:$0]  %s17, 2048, %s19, [#allocation3], 128, 128, 8
    $region5: #{tpu_custom_call.1} parent=1 // pred_fallthru
      _
    // Predicated region
    $region6: #{tpu_custom_call.1} parent=1 // pred_check
      _
    $region7: #{tpu_custom_call.1} parent=1 // pred_check_branch
      %26 = sbr.rel (0) target = $region9
    $region8: #{tpu_custom_call.1} parent=1 // pred_region
      %27 = dma.done [#allocation3], 2048
    $region9: #{tpu_custom_call.1} parent=1 // pred_fallthru
      _
    %s28 = sadd.s32 0, 0
    %s29 = smul.u32 8, %s28
    %v30 = vld [vmem:[#allocation2] sm:$0xff]
    %v31 = vld [vmem:[#allocation2 + $0x8] sm:$0xff]
    %v32 = vld [vmem:[#allocation2 + $0x10] sm:$0xff]
    %v33 = vld [vmem:[#allocation2 + $0x18] sm:$0xff]
    %v34 = vld [vmem:[#allocation2 + $0x20] sm:$0xff]
    %v35 = vld [vmem:[#allocation2 + $0x28] sm:$0xff]
    %v36 = vld [vmem:[#allocation2 + $0x30] sm:$0xff]
    %v37 = vld [vmem:[#allocation2 + $0x38] sm:$0xff]
    %v38 = vld [vmem:[#allocation2 + $0x40] sm:$0xff]
    %v39 = vld [vmem:[#allocation2 + $0x48] sm:$0xff]
    %v40 = vld [vmem:[#allocation2 + $0x50] sm:$0xff]
    %v41 = vld [vmem:[#allocation2 + $0x58] sm:$0xff]
    %v42 = vld [vmem:[#allocation2 + $0x60] sm:$0xff]
    %v43 = vld [vmem:[#allocation2 + $0x68] sm:$0xff]
    %v44 = vld [vmem:[#allocation2 + $0x70] sm:$0xff]
    %v45 = vld [vmem:[#allocation2 + $0x78] sm:$0xff]
    %vm62 = vcmask 1040384
    %v63 = vrot.slane %v30, 7
    %v64 = vrot.slane %v31, 7
    %v65 = vsel %vm62, %v63, %v64
    %v66 = vrot.slane %v32, 7
    %v67 = vrot.slane %v33, 7
    %v68 = vsel %vm62, %v66, %v67
    %v69 = vrot.slane %v34, 7
    %v70 = vrot.slane %v35, 7
    %v71 = vsel %vm62, %v69, %v70
    %v72 = vrot.slane %v36, 7
    %v73 = vrot.slane %v37, 7
    %v74 = vsel %vm62, %v72, %v73
    %v75 = vrot.slane %v38, 7
    %v76 = vrot.slane %v39, 7
    %v77 = vsel %vm62, %v75, %v76
    %v78 = vrot.slane %v40, 7
    %v79 = vrot.slane %v41, 7
    %v80 = vsel %vm62, %v78, %v79
    %v81 = vrot.slane %v42, 7
    %v82 = vrot.slane %v43, 7
    %v83 = vsel %vm62, %v81, %v82
    %v84 = vrot.slane %v44, 7
    %v85 = vrot.slane %v45, 7
    %v86 = vsel %vm62, %v84, %v85
    %v103 = vsub.f32 %v30, %v63
    %v104 = vsub.f32 %v31, %v65
    %v105 = vsub.f32 %v32, %v66
    %v106 = vsub.f32 %v33, %v68
    %v107 = vsub.f32 %v34, %v69
    %v108 = vsub.f32 %v35, %v71
    %v109 = vsub.f32 %v36, %v72
    %v110 = vsub.f32 %v37, %v74
    %v111 = vsub.f32 %v38, %v75
    %v112 = vsub.f32 %v39, %v77
    %v113 = vsub.f32 %v40, %v78
    %v114 = vsub.f32 %v41, %v80
    %v115 = vsub.f32 %v42, %v81
    %v116 = vsub.f32 %v43, %v83
    %v117 = vsub.f32 %v44, %v84
    %v118 = vsub.f32 %v45, %v86
    %v119 = vand.u32 2147483647, %v103
    %v120 = vand.u32 2147483647, %v104
    %v121 = vand.u32 2147483647, %v105
    %v122 = vand.u32 2147483647, %v106
    %v123 = vand.u32 2147483647, %v107
    %v124 = vand.u32 2147483647, %v108
    %v125 = vand.u32 2147483647, %v109
    %v126 = vand.u32 2147483647, %v110
    %v127 = vand.u32 2147483647, %v111
    %v128 = vand.u32 2147483647, %v112
    %v129 = vand.u32 2147483647, %v113
    %v130 = vand.u32 2147483647, %v114
    %v131 = vand.u32 2147483647, %v115
    %v132 = vand.u32 2147483647, %v116
    %v133 = vand.u32 2147483647, %v117
    %v134 = vand.u32 2147483647, %v118
    %vm151 = vcmask 1046528
    %v152 = vrot.slane %v119, 1
    %v153 = vrot.slane %v120, 1
    %v154 = vsel %vm151, %v152, %v153
    %v155 = vrot.slane %v121, 1
    %v156 = vrot.slane %v122, 1
    %v157 = vsel %vm151, %v155, %v156
    %v158 = vrot.slane %v123, 1
    %v159 = vrot.slane %v124, 1
    %v160 = vsel %vm151, %v158, %v159
    %v161 = vrot.slane %v125, 1
    %v162 = vrot.slane %v126, 1
    %v163 = vsel %vm151, %v161, %v162
    %v164 = vrot.slane %v127, 1
    %v165 = vrot.slane %v128, 1
    %v166 = vsel %vm151, %v164, %v165
    %v167 = vrot.slane %v129, 1
    %v168 = vrot.slane %v130, 1
    %v169 = vsel %vm151, %v167, %v168
    %v170 = vrot.slane %v131, 1
    %v171 = vrot.slane %v132, 1
    %v172 = vsel %vm151, %v170, %v171
    %v173 = vrot.slane %v133, 1
    %v174 = vrot.slane %v134, 1
    %v175 = vsel %vm151, %v173, %v174
    %vm192 = vcmask 130048
    %v193 = vsel %vm192, %v154, 0.0
    %vm194 = vcmask 129024
    %v195 = vsel %vm194, %v153, 0.0
    %v196 = vadd.f32 %v193, %v195
    %v197 = vsel %vm192, %v157, 0.0
    %v198 = vadd.f32 %v196, %v197
    %v199 = vsel %vm194, %v156, 0.0
    %v200 = vadd.f32 %v198, %v199
    %v201 = vsel %vm192, %v160, 0.0
    %v202 = vadd.f32 %v200, %v201
    %v203 = vsel %vm194, %v159, 0.0
    %v204 = vadd.f32 %v202, %v203
    %v205 = vsel %vm192, %v163, 0.0
    %v206 = vadd.f32 %v204, %v205
    %v207 = vsel %vm194, %v162, 0.0
    %v208 = vadd.f32 %v206, %v207
    %v209 = vsel %vm192, %v166, 0.0
    %v210 = vadd.f32 %v208, %v209
    %v211 = vsel %vm194, %v165, 0.0
    %v212 = vadd.f32 %v210, %v211
    %v213 = vsel %vm192, %v169, 0.0
    %v214 = vadd.f32 %v212, %v213
    %v215 = vsel %vm194, %v168, 0.0
    %v216 = vadd.f32 %v214, %v215
    %v217 = vsel %vm192, %v172, 0.0
    %v218 = vadd.f32 %v216, %v217
    %v219 = vsel %vm194, %v171, 0.0
    %v220 = vadd.f32 %v218, %v219
    %v221 = vsel %vm192, %v175, 0.0
    %v222 = vadd.f32 %v220, %v221
    %v223 = vsel %vm194, %v174, 0.0
    %v224 = vadd.f32 %v222, %v223
    %225 = vadd.xlane.f32.xlu0 %v224
    %v226 = vpop.xlane.xlu0 %225
    %v227 = vrot.slane %v226, 4
    %v228 = vadd.f32 %v226, %v227
    %v229 = vrot.slane %v228, 2
    %v230 = vadd.f32 %v228, %v229
    %v231 = vrot.slane %v230, 1
    %v232 = vadd.f32 %v230, %v231
    %s233 = vtos %v232
    %s234 = sadd.f32 %s233, 0.0
    %235 = vrot.lane.b32.xlu0 %v30, 1
    %v236 = vpop.permute.xlu0 %235
    %237 = vrot.lane.b32.xlu0 %v31, 1
    %v238 = vpop.permute.xlu0 %237
    %239 = vrot.lane.b32.xlu0 %v32, 1
    %v240 = vpop.permute.xlu0 %239
    %241 = vrot.lane.b32.xlu0 %v33, 1
    %v242 = vpop.permute.xlu0 %241
    %243 = vrot.lane.b32.xlu0 %v34, 1
    %v244 = vpop.permute.xlu0 %243
    %245 = vrot.lane.b32.xlu0 %v35, 1
    %v246 = vpop.permute.xlu0 %245
    %247 = vrot.lane.b32.xlu0 %v36, 1
    %v248 = vpop.permute.xlu0 %247
    %249 = vrot.lane.b32.xlu0 %v37, 1
    %v250 = vpop.permute.xlu0 %249
    %251 = vrot.lane.b32.xlu0 %v38, 1
    %v252 = vpop.permute.xlu0 %251
    %253 = vrot.lane.b32.xlu0 %v39, 1
    %v254 = vpop.permute.xlu0 %253
    %255 = vrot.lane.b32.xlu0 %v40, 1
    %v256 = vpop.permute.xlu0 %255
    %257 = vrot.lane.b32.xlu0 %v41, 1
    %v258 = vpop.permute.xlu0 %257
    %259 = vrot.lane.b32.xlu0 %v42, 1
    %v260 = vpop.permute.xlu0 %259
    %261 = vrot.lane.b32.xlu0 %v43, 1
    %v262 = vpop.permute.xlu0 %261
    %263 = vrot.lane.b32.xlu0 %v44, 1
    %v264 = vpop.permute.xlu0 %263
    %265 = vrot.lane.b32.xlu0 %v45, 1
    %v266 = vpop.permute.xlu0 %265
    %v283 = vsub.f32 %v30, %v236
    %v284 = vsub.f32 %v31, %v238
    %v285 = vsub.f32 %v32, %v240
    %v286 = vsub.f32 %v33, %v242
    %v287 = vsub.f32 %v34, %v244
    %v288 = vsub.f32 %v35, %v246
    %v289 = vsub.f32 %v36, %v248
    %v290 = vsub.f32 %v37, %v250
    %v291 = vsub.f32 %v38, %v252
    %v292 = vsub.f32 %v39, %v254
    %v293 = vsub.f32 %v40, %v256
    %v294 = vsub.f32 %v41, %v258
    %v295 = vsub.f32 %v42, %v260
    %v296 = vsub.f32 %v43, %v262
    %v297 = vsub.f32 %v44, %v264
    %v298 = vsub.f32 %v45, %v266
    %v299 = vand.u32 2147483647, %v283
    %v300 = vand.u32 2147483647, %v284
    %v301 = vand.u32 2147483647, %v285
    %v302 = vand.u32 2147483647, %v286
    %v303 = vand.u32 2147483647, %v287
    %v304 = vand.u32 2147483647, %v288
    %v305 = vand.u32 2147483647, %v289
    %v306 = vand.u32 2147483647, %v290
    %v307 = vand.u32 2147483647, %v291
    %v308 = vand.u32 2147483647, %v292
    %v309 = vand.u32 2147483647, %v293
    %v310 = vand.u32 2147483647, %v294
    %v311 = vand.u32 2147483647, %v295
    %v312 = vand.u32 2147483647, %v296
    %v313 = vand.u32 2147483647, %v297
    %v314 = vand.u32 2147483647, %v298
    %331 = vrot.lane.b32.xlu0 %v299, 127
    %v332 = vpop.permute.xlu0 %331
    %333 = vrot.lane.b32.xlu0 %v300, 127
    %v334 = vpop.permute.xlu0 %333
    %335 = vrot.lane.b32.xlu0 %v301, 127
    %v336 = vpop.permute.xlu0 %335
    %337 = vrot.lane.b32.xlu0 %v302, 127
    %v338 = vpop.permute.xlu0 %337
    %339 = vrot.lane.b32.xlu0 %v303, 127
    %v340 = vpop.permute.xlu0 %339
    %341 = vrot.lane.b32.xlu0 %v304, 127
    %v342 = vpop.permute.xlu0 %341
    %343 = vrot.lane.b32.xlu0 %v305, 127
    %v344 = vpop.permute.xlu0 %343
    %345 = vrot.lane.b32.xlu0 %v306, 127
    %v346 = vpop.permute.xlu0 %345
    %347 = vrot.lane.b32.xlu0 %v307, 127
    %v348 = vpop.permute.xlu0 %347
    %349 = vrot.lane.b32.xlu0 %v308, 127
    %v350 = vpop.permute.xlu0 %349
    %351 = vrot.lane.b32.xlu0 %v309, 127
    %v352 = vpop.permute.xlu0 %351
    %353 = vrot.lane.b32.xlu0 %v310, 127
    %v354 = vpop.permute.xlu0 %353
    %355 = vrot.lane.b32.xlu0 %v311, 127
    %v356 = vpop.permute.xlu0 %355
    %357 = vrot.lane.b32.xlu0 %v312, 127
    %v358 = vpop.permute.xlu0 %357
    %359 = vrot.lane.b32.xlu0 %v313, 127
    %v360 = vpop.permute.xlu0 %359
    %361 = vrot.lane.b32.xlu0 %v314, 127
    %v362 = vpop.permute.xlu0 %361
    %vm379 = vcmask 121856
    %v380 = vsel %vm379, %v332, 0.0
    %v381 = vsel %vm379, %v334, 0.0
    %v382 = vadd.f32 %v380, %v381
    %v383 = vsel %vm379, %v336, 0.0
    %v384 = vadd.f32 %v382, %v383
    %v385 = vsel %vm379, %v338, 0.0
    %v386 = vadd.f32 %v384, %v385
    %v387 = vsel %vm379, %v340, 0.0
    %v388 = vadd.f32 %v386, %v387
    %v389 = vsel %vm379, %v342, 0.0
    %v390 = vadd.f32 %v388, %v389
    %v391 = vsel %vm379, %v344, 0.0
    %v392 = vadd.f32 %v390, %v391
    %v393 = vsel %vm379, %v346, 0.0
    %v394 = vadd.f32 %v392, %v393
    %v395 = vsel %vm379, %v348, 0.0
    %v396 = vadd.f32 %v394, %v395
    %v397 = vsel %vm379, %v350, 0.0
    %v398 = vadd.f32 %v396, %v397
    %v399 = vsel %vm379, %v352, 0.0
    %v400 = vadd.f32 %v398, %v399
    %v401 = vsel %vm379, %v354, 0.0
    %v402 = vadd.f32 %v400, %v401
    %v403 = vsel %vm379, %v356, 0.0
    %v404 = vadd.f32 %v402, %v403
    %v405 = vsel %vm379, %v358, 0.0
    %v406 = vadd.f32 %v404, %v405
    %v407 = vsel %vm379, %v360, 0.0
    %v408 = vadd.f32 %v406, %v407
    %v409 = vsel %vm379, %v362, 0.0
    %v410 = vadd.f32 %v408, %v409
    %411 = vadd.xlane.f32.xlu0 %v410
    %v412 = vpop.xlane.xlu0 %411
    %v413 = vrot.slane %v412, 4
    %v414 = vadd.f32 %v412, %v413
    %v415 = vrot.slane %v414, 2
    %v416 = vadd.f32 %v414, %v415
    %v417 = vrot.slane %v416, 1
    %v418 = vadd.f32 %v416, %v417
    %s419 = vtos %v418
    %s420 = sadd.f32 %s234, %s419
    %p421 = scmp.eq.s32.totalorder 0, 0
    %p422 = scmp.eq.s32.totalorder 0, 0
    %p423 = pnand %p421, %p422
    %p424 = pneg %p423
    // Predicated region
    $region10: #{tpu_custom_call.1} parent=1 // pred_check
      _
    $region11: #{tpu_custom_call.1} parent=1 // pred_check_branch
      %426 = sbr.rel (%p423) target = $region13
    $region12: #{tpu_custom_call.1} parent=1 // pred_region
      %s427 = scalar_lea.smem [#allocation5], 0
      %428 = sst [smem:[%s427]] 0.0
    $region13: #{tpu_custom_call.1} parent=1 // pred_fallthru
      _
    %s429 = sld [smem:[#allocation5]]
    %s430 = sadd.f32 %s429, %s420
    %s431 = scalar_lea.smem [#allocation5], 0
    %432 = sst [smem:[%s431]] %s430
    // Predicated region
    $region14: #{tpu_custom_call.1} parent=1 // pred_check
      _
    $region15: #{tpu_custom_call.1} parent=1 // pred_check_branch
      %434 = sbr.rel (0) target = $region17
    $region16: #{tpu_custom_call.1} parent=1 // pred_region
      %s436 = ssub.s32 16, 16
      %437 = vsyncadd [#allocation4], %s436
      %440 = dma.smem_to_hbm [#allocation5], 16, %s1, [#allocation4]
    $region17: #{tpu_custom_call.1} parent=1 // pred_fallthru
      _
    // Predicated region
    $region18: #{tpu_custom_call.1} parent=1 // pred_check
      _
    $region19: #{tpu_custom_call.1} parent=1 // pred_check_branch
      %442 = sbr.rel (0) target = $region21
    $region20: #{tpu_custom_call.1} parent=1 // pred_region
      %443 = dma.done [#allocation4], 16
    $region21: #{tpu_custom_call.1} parent=1 // pred_fallthru
      _
    %444 = sfence
    %445 = vsyncpa [#allocation3], 1
    %446 = vsyncpa [#allocation4], 1

</llo_original>
